<compile_context>
chip_gen: v7x
topology: tpu7x:2x2x1
jax: 0.10.0
libtpu: 0.0.40
codegen_flags: <defaults>
</compile_context>

<pallas_src>
import numpy as np
import jax
import jax.numpy as jnp
from jax.experimental import pallas as pl
from jax.experimental.pallas import tpu as pltpu


def ffm_kernel(e_ref, lin_ref, bias_ref, out_ref):
    """One batch tile of the FFM forward pass.

    e_ref   : (F, F, D, TB) VMEM   e_ref[i, j, d, b] = ffm_table_i[x_off[b, j]][d]
    lin_ref : (F, TB)       VMEM   lin_ref[f, b]     = fc_weight[x_off[b, f], 0]
    bias_ref: (1,)          SMEM   linear bias
    out_ref : (1, TB)       VMEM   lane-dense output tile
    """
    num_fields = e_ref.shape[0]
    tb = e_ref.shape[-1]

    E = e_ref[...]          # (F, F, D, TB)
    lin = lin_ref[...]      # (F, TB)

    # FeaturesLinear: sum over fields + bias  -> (1, TB)
    linear = jnp.sum(lin, axis=0, keepdims=True) + bias_ref[0]

    # FieldAwareFactorizationMachine interaction term:
    #   sum_{i<j} sum_d E[j, i, d, b] * E[i, j, d, b]
    # = 0.5 * ( sum_{i,j,d} E[i,j,d,b]*E[j,i,d,b]  -  sum_{i,d} E[i,i,d,b]^2 )
    # Only F iterations, each a big vectorized multiply + sublane/accumulate
    # reduce; batch stays on the lanes the whole time.
    full = jnp.zeros((1, tb), dtype=jnp.float32)
    diag = jnp.zeros((1, tb), dtype=jnp.float32)
    for i in range(num_fields):
        row = E[i]                         # (F, D, TB): row[j, d, b] = E[i, j, d, b]
        col = E[:, i]                      # (F, D, TB): col[j, d, b] = E[j, i, d, b]
        partial = jnp.sum(row * col, axis=0)                     # (D, TB)
        full = full + jnp.sum(partial, axis=0, keepdims=True)    # (1, TB)
        d = E[i, i]                                              # (D, TB)
        diag = diag + jnp.sum(d * d, axis=0, keepdims=True)      # (1, TB)
    inter = 0.5 * (full - diag)

    out_ref[...] = linear + inter


def ffm_model_forward(x, fc_weight, fc_bias, ffm_weights, offsets, *, batch_tile=128):
    """JAX wrapper matching _FieldAwareFactorizationMachineModel.forward.

    x           : (B, F) int32
    fc_weight   : (V, 1) float32     linear embedding table
    fc_bias     : (1,)   float32
    ffm_weights : (F, V, D) float32  one embedding table per field
    offsets     : (F,) int32
    returns     : (B,) float32
    """
    B, F = x.shape
    D = ffm_weights.shape[-1]
    TB = int(batch_tile)
    Bp = ((B + TB - 1) // TB) * TB          # pad batch to a multiple of the tile

    x_off = x + offsets[None, :]            # (B, F)
    if Bp != B:
        # Pad with a valid index (0); padded rows are discarded after the kernel.
        x_off = jnp.concatenate(
            [x_off, jnp.zeros((Bp - B, F), dtype=x_off.dtype)], axis=0)

    # Embedding gathers stay in JAX glue; the transposes put batch on the lane
    # axis and fuse with the gathers in XLA.
    lin_t = jnp.take(fc_weight[:, 0], x_off, axis=0).T           # (F, Bp)
    E0 = jnp.take(ffm_weights, x_off, axis=1)                    # (F, Bp, F, D)
    Et = jnp.transpose(E0, (0, 2, 3, 1))                         # (F, F, D, Bp)
    # TODO(synk): avoid materializing Et in HBM (scalar-prefetch x_off and
    # DMA-gather ffm_weights rows inside the kernel) to cut HBM traffic further.

    # VMEM budget: double-buffered E/lin/out tiles with headroom; conservative
    # cap keeps it valid on v7x's 64 MiB VMEM while raising the 32 MiB default
    # when large (F, D, TB) tiles need it on v5e/v6e.
    tile_bytes = (F * F * D + F + 1) * TB * 4
    vmem_limit = int(min(max(32 * 1024 * 1024, 4 * tile_bytes), 48 * 1024 * 1024))

    out = pl.pallas_call(
        ffm_kernel,
        out_shape=jax.ShapeDtypeStruct((1, Bp), jnp.float32),
        grid=(Bp // TB,),
        in_specs=[
            pl.BlockSpec((F, F, D, TB), lambda b: (0, 0, 0, b)),
            pl.BlockSpec((F, TB), lambda b: (0, b)),
            pl.BlockSpec(memory_space=pltpu.MemorySpace.SMEM),
        ],
        out_specs=pl.BlockSpec((1, TB), lambda b: (0, b)),
        compiler_params=pltpu.CompilerParams(
            dimension_semantics=("parallel",),
            vmem_limit_bytes=vmem_limit,
        ),
    )(Et, lin_t, fc_bias)

    return out[0, :B]


def reference_forward(x, fc_weight, fc_bias, ffm_weights, offsets):
    """Pure-JAX reference mirroring the PyTorch module."""
    x_off = x + offsets[None, :]
    F = x.shape[1]
    lin = jnp.sum(jnp.take(fc_weight, x_off, axis=0), axis=1) + fc_bias   # (B, 1)
    xs = [jnp.take(ffm_weights[i], x_off, axis=0) for i in range(F)]      # each (B, F, D)
    ix = []
    for i in range(F - 1):
        for j in range(i + 1, F):
            ix.append(xs[j][:, i] * xs[i][:, j])
    ix = jnp.stack(ix, axis=1)                                            # (B, P, D)
    ffm_term = jnp.sum(jnp.sum(ix, axis=1), axis=1, keepdims=True)        # (B, 1)
    return (lin + ffm_term)[:, 0]


if __name__ == "__main__":
    # Small, deterministic setup.
    field_dims = np.array([3, 5, 7, 9], dtype=np.int64)
    num_fields = len(field_dims)          # F = 4
    vocab = int(field_dims.sum())         # V = 24
    embed_dim = 8                         # D
    batch = 200                           # B (not a multiple of 128 -> tests padding + 2 grid tiles)

    offsets_np = np.array((0, *np.cumsum(field_dims)[:-1]), dtype=np.int32)
    offsets = jnp.asarray(offsets_np)

    key = jax.random.PRNGKey(0)
    k_fc, k_ffm, k_x = jax.random.split(key, 3)

    # FeaturesLinear.fc: default nn.Embedding init ~ N(0, 1); bias = zeros.
    fc_weight = jax.random.normal(k_fc, (vocab, 1), dtype=jnp.float32)
    fc_bias = jnp.zeros((1,), dtype=jnp.float32)

    # FFM embedding tables: xavier_uniform_ on (V, D) weights.
    bound = float(np.sqrt(6.0 / (vocab + embed_dim)))
    ffm_weights = jax.random.uniform(
        k_ffm, (num_fields, vocab, embed_dim), dtype=jnp.float32,
        minval=-bound, maxval=bound)

    # Input indices: x[:, f] in [0, field_dims[f]).
    u = jax.random.uniform(k_x, (batch, num_fields))
    x = (u * jnp.asarray(field_dims, dtype=jnp.float32)).astype(jnp.int32)

    out = ffm_model_forward(x, fc_weight, fc_bias, ffm_weights, offsets)
    out = jax.block_until_ready(out)

    ref = reference_forward(x, fc_weight, fc_bias, ffm_weights, offsets)
    ref = jax.block_until_ready(ref)

    assert out.shape == (batch,)
    np.testing.assert_allclose(np.asarray(out), np.asarray(ref), rtol=1e-5, atol=1e-5)

    print("KERNEL_OK")
</pallas_src>

<mosaic_0001>
module attributes {stable_mosaic.version = 11 : i64} {
  func.func @ffm_kernel(%arg0: i32, %arg1: memref<4x4x8x128xf32, #tpu.memory_space<vmem>>, %arg2: memref<4x128xf32, #tpu.memory_space<vmem>>, %arg3: memref<1xf32, #tpu.memory_space<smem>>, %arg4: memref<1x128xf32, #tpu.memory_space<vmem>>) attributes {dimension_semantics = [#tpu.dimension_semantics<parallel>], iteration_bounds = array<i64: 2>, scalar_prefetch = 0 : i64, scratch_operands = 0 : i64, tpu.core_type = #tpu.core_type<tc>, window_params = [{transform_indices = @transform_0, window_bounds = array<i64: 4, 4, 8, 128>}, {transform_indices = @transform_1, window_bounds = array<i64: 4, 128>}, {transform_indices = @transform_2, window_bounds = array<i64: 1>}, {transform_indices = @transform_3, window_bounds = array<i64: 1, 128>}]} {
    %c0 = arith.constant 0 : index
    %c0_0 = arith.constant 0 : index
    %c0_1 = arith.constant 0 : index
    %c0_2 = arith.constant 0 : index
    %0 = vector.load %arg1[%c0, %c0_0, %c0_1, %c0_2] : memref<4x4x8x128xf32, #tpu.memory_space<vmem>>, vector<4x4x8x128xf32>
    %c0_3 = arith.constant 0 : index
    %c0_4 = arith.constant 0 : index
    %1 = vector.load %arg2[%c0_3, %c0_4] : memref<4x128xf32, #tpu.memory_space<vmem>>, vector<4x128xf32>
    %cst = arith.constant dense<0.000000e+00> : vector<128xf32>
    %2 = vector.multi_reduction <add>, %1, %cst [0] : vector<4x128xf32> to vector<128xf32>
    %3 = vector.shape_cast %2 : vector<128xf32> to vector<1x128xf32>
    %c0_5 = arith.constant 0 : index
    %4 = memref.load %arg3[%c0_5] : memref<1xf32, #tpu.memory_space<smem>>
    %5 = vector.broadcast %4 : f32 to vector<1x128xf32>
    %6 = arith.addf %3, %5 : vector<1x128xf32>
    %cst_6 = arith.constant 0.000000e+00 : f32
    %7 = vector.broadcast %cst_6 : f32 to vector<1x128xf32>
    %cst_7 = arith.constant 0.000000e+00 : f32
    %8 = vector.broadcast %cst_7 : f32 to vector<1x128xf32>
    %9 = vector.extract_strided_slice %0 {offsets = [0, 0, 0, 0], sizes = [1, 4, 8, 128], strides = [1, 1, 1, 1]} : vector<4x4x8x128xf32> to vector<1x4x8x128xf32>
    %10 = vector.shape_cast %9 : vector<1x4x8x128xf32> to vector<4x8x128xf32>
    %11 = vector.extract_strided_slice %0 {offsets = [0, 0, 0, 0], sizes = [4, 1, 8, 128], strides = [1, 1, 1, 1]} : vector<4x4x8x128xf32> to vector<4x1x8x128xf32>
    %12 = vector.shape_cast %11 : vector<4x1x8x128xf32> to vector<4x8x128xf32>
    %13 = arith.mulf %10, %12 : vector<4x8x128xf32>
    %cst_8 = arith.constant dense<0.000000e+00> : vector<8x128xf32>
    %14 = vector.multi_reduction <add>, %13, %cst_8 [0] : vector<4x8x128xf32> to vector<8x128xf32>
    %cst_9 = arith.constant dense<0.000000e+00> : vector<128xf32>
    %15 = vector.multi_reduction <add>, %14, %cst_9 [0] : vector<8x128xf32> to vector<128xf32>
    %16 = vector.shape_cast %15 : vector<128xf32> to vector<1x128xf32>
    %17 = arith.addf %7, %16 : vector<1x128xf32>
    %18 = vector.extract_strided_slice %0 {offsets = [0, 0, 0, 0], sizes = [1, 1, 8, 128], strides = [1, 1, 1, 1]} : vector<4x4x8x128xf32> to vector<1x1x8x128xf32>
    %19 = vector.shape_cast %18 : vector<1x1x8x128xf32> to vector<8x128xf32>
    %20 = arith.mulf %19, %19 : vector<8x128xf32>
    %cst_10 = arith.constant dense<0.000000e+00> : vector<128xf32>
    %21 = vector.multi_reduction <add>, %20, %cst_10 [0] : vector<8x128xf32> to vector<128xf32>
    %22 = vector.shape_cast %21 : vector<128xf32> to vector<1x128xf32>
    %23 = arith.addf %8, %22 : vector<1x128xf32>
    %24 = vector.extract_strided_slice %0 {offsets = [1, 0, 0, 0], sizes = [1, 4, 8, 128], strides = [1, 1, 1, 1]} : vector<4x4x8x128xf32> to vector<1x4x8x128xf32>
    %25 = vector.shape_cast %24 : vector<1x4x8x128xf32> to vector<4x8x128xf32>
    %26 = vector.extract_strided_slice %0 {offsets = [0, 1, 0, 0], sizes = [4, 1, 8, 128], strides = [1, 1, 1, 1]} : vector<4x4x8x128xf32> to vector<4x1x8x128xf32>
    %27 = vector.shape_cast %26 : vector<4x1x8x128xf32> to vector<4x8x128xf32>
    %28 = arith.mulf %25, %27 : vector<4x8x128xf32>
    %cst_11 = arith.constant dense<0.000000e+00> : vector<8x128xf32>
    %29 = vector.multi_reduction <add>, %28, %cst_11 [0] : vector<4x8x128xf32> to vector<8x128xf32>
    %cst_12 = arith.constant dense<0.000000e+00> : vector<128xf32>
    %30 = vector.multi_reduction <add>, %29, %cst_12 [0] : vector<8x128xf32> to vector<128xf32>
    %31 = vector.shape_cast %30 : vector<128xf32> to vector<1x128xf32>
    %32 = arith.addf %17, %31 : vector<1x128xf32>
    %33 = vector.extract_strided_slice %0 {offsets = [1, 1, 0, 0], sizes = [1, 1, 8, 128], strides = [1, 1, 1, 1]} : vector<4x4x8x128xf32> to vector<1x1x8x128xf32>
    %34 = vector.shape_cast %33 : vector<1x1x8x128xf32> to vector<8x128xf32>
    %35 = arith.mulf %34, %34 : vector<8x128xf32>
    %cst_13 = arith.constant dense<0.000000e+00> : vector<128xf32>
    %36 = vector.multi_reduction <add>, %35, %cst_13 [0] : vector<8x128xf32> to vector<128xf32>
    %37 = vector.shape_cast %36 : vector<128xf32> to vector<1x128xf32>
    %38 = arith.addf %23, %37 : vector<1x128xf32>
    %39 = vector.extract_strided_slice %0 {offsets = [2, 0, 0, 0], sizes = [1, 4, 8, 128], strides = [1, 1, 1, 1]} : vector<4x4x8x128xf32> to vector<1x4x8x128xf32>
    %40 = vector.shape_cast %39 : vector<1x4x8x128xf32> to vector<4x8x128xf32>
    %41 = vector.extract_strided_slice %0 {offsets = [0, 2, 0, 0], sizes = [4, 1, 8, 128], strides = [1, 1, 1, 1]} : vector<4x4x8x128xf32> to vector<4x1x8x128xf32>
    %42 = vector.shape_cast %41 : vector<4x1x8x128xf32> to vector<4x8x128xf32>
    %43 = arith.mulf %40, %42 : vector<4x8x128xf32>
    %cst_14 = arith.constant dense<0.000000e+00> : vector<8x128xf32>
    %44 = vector.multi_reduction <add>, %43, %cst_14 [0] : vector<4x8x128xf32> to vector<8x128xf32>
    %cst_15 = arith.constant dense<0.000000e+00> : vector<128xf32>
    %45 = vector.multi_reduction <add>, %44, %cst_15 [0] : vector<8x128xf32> to vector<128xf32>
    %46 = vector.shape_cast %45 : vector<128xf32> to vector<1x128xf32>
    %47 = arith.addf %32, %46 : vector<1x128xf32>
    %48 = vector.extract_strided_slice %0 {offsets = [2, 2, 0, 0], sizes = [1, 1, 8, 128], strides = [1, 1, 1, 1]} : vector<4x4x8x128xf32> to vector<1x1x8x128xf32>
    %49 = vector.shape_cast %48 : vector<1x1x8x128xf32> to vector<8x128xf32>
    %50 = arith.mulf %49, %49 : vector<8x128xf32>
    %cst_16 = arith.constant dense<0.000000e+00> : vector<128xf32>
    %51 = vector.multi_reduction <add>, %50, %cst_16 [0] : vector<8x128xf32> to vector<128xf32>
    %52 = vector.shape_cast %51 : vector<128xf32> to vector<1x128xf32>
    %53 = arith.addf %38, %52 : vector<1x128xf32>
    %54 = vector.extract_strided_slice %0 {offsets = [3, 0, 0, 0], sizes = [1, 4, 8, 128], strides = [1, 1, 1, 1]} : vector<4x4x8x128xf32> to vector<1x4x8x128xf32>
    %55 = vector.shape_cast %54 : vector<1x4x8x128xf32> to vector<4x8x128xf32>
    %56 = vector.extract_strided_slice %0 {offsets = [0, 3, 0, 0], sizes = [4, 1, 8, 128], strides = [1, 1, 1, 1]} : vector<4x4x8x128xf32> to vector<4x1x8x128xf32>
    %57 = vector.shape_cast %56 : vector<4x1x8x128xf32> to vector<4x8x128xf32>
    %58 = arith.mulf %55, %57 : vector<4x8x128xf32>
    %cst_17 = arith.constant dense<0.000000e+00> : vector<8x128xf32>
    %59 = vector.multi_reduction <add>, %58, %cst_17 [0] : vector<4x8x128xf32> to vector<8x128xf32>
    %cst_18 = arith.constant dense<0.000000e+00> : vector<128xf32>
    %60 = vector.multi_reduction <add>, %59, %cst_18 [0] : vector<8x128xf32> to vector<128xf32>
    %61 = vector.shape_cast %60 : vector<128xf32> to vector<1x128xf32>
    %62 = arith.addf %47, %61 : vector<1x128xf32>
    %63 = vector.extract_strided_slice %0 {offsets = [3, 3, 0, 0], sizes = [1, 1, 8, 128], strides = [1, 1, 1, 1]} : vector<4x4x8x128xf32> to vector<1x1x8x128xf32>
    %64 = vector.shape_cast %63 : vector<1x1x8x128xf32> to vector<8x128xf32>
    %65 = arith.mulf %64, %64 : vector<8x128xf32>
    %cst_19 = arith.constant dense<0.000000e+00> : vector<128xf32>
    %66 = vector.multi_reduction <add>, %65, %cst_19 [0] : vector<8x128xf32> to vector<128xf32>
    %67 = vector.shape_cast %66 : vector<128xf32> to vector<1x128xf32>
    %68 = arith.addf %53, %67 : vector<1x128xf32>
    %69 = arith.subf %62, %68 : vector<1x128xf32>
    %cst_20 = arith.constant 5.000000e-01 : f32
    %70 = vector.broadcast %cst_20 : f32 to vector<1x128xf32>
    %71 = arith.mulf %70, %69 : vector<1x128xf32>
    %72 = arith.addf %6, %71 : vector<1x128xf32>
    %c0_21 = arith.constant 0 : index
    %c0_22 = arith.constant 0 : index
    %73 = vector.load %arg4[%c0_21, %c0_22] : memref<1x128xf32, #tpu.memory_space<vmem>>, vector<1x128xf32>
    tpu.vector_store %arg4[%c0_21, %c0_22], %72 {strides = array<i32>} : memref<1x128xf32, #tpu.memory_space<vmem>>, vector<1x128xf32>,
    return
  }
  func.func @transform_0(%arg0: i32) -> (i32, i32, i32, i32) {
    %c0_i32 = arith.constant 0 : i32
    %c0_i32_0 = arith.constant 0 : i32
    %c0_i32_1 = arith.constant 0 : i32
    %c0_i32_2 = arith.constant 0 : i32
    return %c0_i32, %c0_i32_0, %c0_i32_1, %arg0 : i32, i32, i32, i32
  }
  func.func @transform_1(%arg0: i32) -> (i32, i32) {
    %c0_i32 = arith.constant 0 : i32
    %c0_i32_0 = arith.constant 0 : i32
    return %c0_i32, %arg0 : i32, i32
  }
  func.func @transform_2(%arg0: i32) -> i32 {
    %c0_i32 = arith.constant 0 : i32
    %c0_i32_0 = arith.constant 0 : i32
    return %c0_i32 : i32
  }
  func.func @transform_3(%arg0: i32) -> (i32, i32) {
    %c0_i32 = arith.constant 0 : i32
    %c0_i32_0 = arith.constant 0 : i32
    return %c0_i32, %arg0 : i32, i32
  }
}

</mosaic_0001>

<llo_original>
// kernel: tpu_custom_call.1
$region0: #{tpu_custom_call.1}
  #allocation0 [shape = 'u32[]', space=smem, size = 0x4, offset = 0x4, fixed_abs, tag = 'smem constant byte address 0x4 - core index']
  #allocation1 [shape = 'u32[144,128]{1,0:T(1,128)}', space=vmem, size = 0x12000, scoped, tag = 'internal scratch']
  #allocation2 [shape = 'f32[1]{0:T(128)S(6)}', space=smem, size = 0x200, scoped, tag = 'scoped memory for tpu_custom_call.1']
  %s0 = inlined_call_operand.hbm [shape: f32[4,4,8,256], index: 0, kind: input, shape index: {}]
  %s1 = inlined_call_operand.hbm [shape: f32[4,256], index: 1, kind: input, shape index: {}]
  %s2 = inlined_call_operand.<no memory space> [shape: f32[1], index: 2, kind: input, shape index: {}]
  %s3 = inlined_call_operand.hbm [shape: f32[1,256], index: 3, kind: output, shape index: {}]
  %s4 = sld [smem:[#allocation0]]
  $region53: #{tpu_custom_call.1} parent=0
    _
  %s6 = ssub.s32 1, %s4
  %s7 = scalar_select 0, %s6, %s4
  %8 = sst [smem:[#allocation2]] %s2
  $region1: #{tpu_custom_call.1} parent=0
    #allocation3 [shape = 'u8[131072]{0}', space=vmem, size = 0x20000, scoped, tag = 'input window, operand 0']
    #allocation4 [shape = 's32[2]{0}', space=sflag, size = 0x8, scoped, tag = 'scoped memory for tpu_custom_call.1']
    #allocation5 [shape = 's32[2]{0}', space=sflag, size = 0x8, scoped, tag = 'scoped memory for tpu_custom_call.1']
    #allocation6 [shape = 'u8[4096]{0}', space=vmem, size = 0x1000, scoped, tag = 'input window, operand 1']
    #allocation7 [shape = 's32[2]{0}', space=sflag, size = 0x8, scoped, tag = 'scoped memory for tpu_custom_call.1']
    #allocation8 [shape = 'u8[1024]{0}', space=vmem, size = 0x400, scoped, tag = 'output window, operand 0']
    %9 = vsyncpa [#allocation4], 0
    %s10 = scalar_lea.sflag [#allocation4], 1
    %11 = vsyncpa %s10, 0
    %12 = vsyncpa [#allocation7], 0
    %s13 = scalar_lea.sflag [#allocation7], 1
    %14 = vsyncpa %s13, 0
    %15 = vsyncpa [#allocation5], 0
    %s16 = scalar_lea.sflag [#allocation5], 1
    %17 = vsyncpa %s16, 0
    loop: start=0, step=1, limit=4
    $region2: #{tpu_custom_call.1} parent=1 // loop_pre_header
      _
    $region3: #{tpu_custom_call.1} parent=1 // loop_header
      %s19 = sphi 0, %s23
      %p20 = scmp.ge.s32.totalorder %s19, 4
      %s29 = sphi 0, %s31
      %s32 = sphi 0, %s29
      %s33 = sphi 0, %s32
      %s49 = sphi 0, %s33
      %s55 = sphi 0, %s57
      %s58 = sphi 0, %s55
      %s59 = sphi 0, %s58
      %s75 = sphi 0, %s59
      %s79 = sphi 0, %s79
      %s81 = sphi 0, %s79
      %s82 = sphi 0, %s81
      %s96 = sphi 0, %s82
      %s102 = sphi 0, %s104
      %s105 = sphi 0, %s102
      %s106 = sphi 0, %s105
      %s122 = sphi 0, %s106
    $region4: #{tpu_custom_call.1} parent=1 // loop_header_branch
      %22 = sbr.rel (%p20) target = $region8
    $region5: #{tpu_custom_call.1} parent=1 // loop_body
      %s24 = ssub.s32 %s19, 1
      %s25 = ssub.s32 %s19, 2
      %s26 = sadd.s32 %s19, 1
      %s27 = ssub.s32 %s19, %s26
      %p28 = scmp.eq.s32.totalorder %s27, 0
      %s30 = sadd.s32 %s29, 1
      %s31 = scalar_select %p28, %s29, %s30
      %p34 = pneg %p28
      %p35 = scmp.eq.s32.totalorder %s19, 1
      %p36 = por %p34, %p35
      %p37 = scmp.ne.s32.totalorder %s29, %s32
      %p38 = scmp.eq.s32.totalorder %s19, 0
      %p39 = por %p37, %p38
      %p40 = scmp.ne.s32.totalorder %s29, %s32
      %p41 = scmp.eq.s32.totalorder %s24, 1
      %p42 = por %p40, %p41
      %p43 = scmp.ne.s32.totalorder %s32, %s33
      %p44 = scmp.eq.s32.totalorder %s24, 0
      %p45 = por %p43, %p44
      %p46 = scmp.ne.s32.totalorder %s32, %s33
      %p47 = scmp.eq.s32.totalorder %s25, 1
      %p48 = por %p46, %p47
      %p50 = scmp.ne.s32.totalorder %s33, %s49
      %p51 = scmp.eq.s32.totalorder %s25, 0
      %p52 = por %p50, %p51
      %s53 = ssub.s32 %s19, %s26
      %p54 = scmp.eq.s32.totalorder %s53, 0
      %s56 = sadd.s32 %s55, 1
      %s57 = scalar_select %p54, %s55, %s56
      %p60 = pneg %p54
      %p61 = scmp.eq.s32.totalorder %s19, 1
      %p62 = por %p60, %p61
      %p63 = scmp.ne.s32.totalorder %s55, %s58
      %p64 = scmp.eq.s32.totalorder %s19, 0
      %p65 = por %p63, %p64
      %p66 = scmp.ne.s32.totalorder %s55, %s58
      %p67 = scmp.eq.s32.totalorder %s24, 1
      %p68 = por %p66, %p67
      %p69 = scmp.ne.s32.totalorder %s58, %s59
      %p70 = scmp.eq.s32.totalorder %s24, 0
      %p71 = por %p69, %p70
      %p72 = scmp.ne.s32.totalorder %s58, %s59
      %p73 = scmp.eq.s32.totalorder %s25, 1
      %p74 = por %p72, %p73
      %p76 = scmp.ne.s32.totalorder %s59, %s75
      %p77 = scmp.eq.s32.totalorder %s25, 0
      %p78 = por %p76, %p77
      %s80 = sadd.s32 %s79, 1
      %p83 = scmp.eq.s32.totalorder %s19, 1
      %p84 = scmp.ne.s32.totalorder %s79, %s81
      %p85 = scmp.eq.s32.totalorder %s19, 0
      %p86 = por %p84, %p85
      %p87 = scmp.ne.s32.totalorder %s79, %s81
      %p88 = scmp.eq.s32.totalorder %s24, 1
      %p89 = por %p87, %p88
      %p90 = scmp.ne.s32.totalorder %s81, %s82
      %p91 = scmp.eq.s32.totalorder %s24, 0
      %p92 = por %p90, %p91
      %p93 = scmp.ne.s32.totalorder %s81, %s82
      %p94 = scmp.eq.s32.totalorder %s25, 1
      %p95 = por %p93, %p94
      %p97 = scmp.ne.s32.totalorder %s82, %s96
      %p98 = scmp.eq.s32.totalorder %s25, 0
      %p99 = por %p97, %p98
      %s100 = ssub.s32 %s19, %s26
      %p101 = scmp.eq.s32.totalorder %s100, 0
      %s103 = sadd.s32 %s102, 1
      %s104 = scalar_select %p101, %s102, %s103
      %p107 = pneg %p101
      %p108 = scmp.eq.s32.totalorder %s19, 1
      %p109 = por %p107, %p108
      %p110 = scmp.ne.s32.totalorder %s102, %s105
      %p111 = scmp.eq.s32.totalorder %s19, 0
      %p112 = por %p110, %p111
      %p113 = scmp.ne.s32.totalorder %s102, %s105
      %p114 = scmp.eq.s32.totalorder %s24, 1
      %p115 = por %p113, %p114
      %p116 = scmp.ne.s32.totalorder %s105, %s106
      %p117 = scmp.eq.s32.totalorder %s24, 0
      %p118 = por %p116, %p117
      %p119 = scmp.ne.s32.totalorder %s105, %s106
      %p120 = scmp.eq.s32.totalorder %s25, 1
      %p121 = por %p119, %p120
      %p123 = scmp.ne.s32.totalorder %s106, %s122
      %p124 = scmp.eq.s32.totalorder %s25, 0
      %p125 = por %p123, %p124
      %p126 = scmp.le.s32.totalorder 1, %s19
      %p127 = scmp.lt.s32.totalorder %s19, 3
      %p128 = pnand %p126, %p127
      %p129 = pneg %p128
      // Predicated region
      $region9: #{tpu_custom_call.1} parent=5 // pred_check
        _
      $region10: #{tpu_custom_call.1} parent=5 // pred_check_branch
        %131 = sbr.rel (%p128) target = $region12
      $region11: #{tpu_custom_call.1} parent=5 // pred_region
        %s132 = ssub.s32 %s19, 1
        // Predicated region
        $region13: #{tpu_custom_call.1} parent=11 // pred_check
          %p133 = pneg %p92
        $region14: #{tpu_custom_call.1} parent=11 // pred_check_branch
          %135 = sbr.rel (%p133) target = $region16
        $region15: #{tpu_custom_call.1} parent=11 // pred_region
          _
        $region16: #{tpu_custom_call.1} parent=11 // pred_fallthru
          _
      $region12: #{tpu_custom_call.1} parent=5 // pred_fallthru
        _
      %p136 = scmp.lt.s32.totalorder %s19, 2
      // Predicated region
      $region17: #{tpu_custom_call.1} parent=5 // pred_check
        %p137 = pneg %p136
      $region18: #{tpu_custom_call.1} parent=5 // pred_check_branch
        %139 = sbr.rel (%p137) target = $region20
      $region19: #{tpu_custom_call.1} parent=5 // pred_region
        // Predicated region
        $region21: #{tpu_custom_call.1} parent=19 // pred_check
          %p140 = pneg %p39
        $region22: #{tpu_custom_call.1} parent=19 // pred_check_branch
          %142 = sbr.rel (%p140) target = $region24
        $region23: #{tpu_custom_call.1} parent=19 // pred_region
          %s143 = sand.u32 %s29, 1
          %s144 = scalar_lea.sflag [#allocation4], %s143
          %s145 = sand.u32 %s29, 1
          %s146 = smul.addr %s145, 128
          %s147 = scalar_lea.vmem [#allocation3], %s146
          %s149 = ssub.s32 2048, 2048
          %150 = vsyncadd %s144, %s149
          %s151 = smul.addr %s19, 128
          %s152 = scalar_lea.hbm %s0, %s151
          %s153 = sshll.u32 %s147, 4
          %s154 = int_to_ptr.vmem [resolvable:$true] %s153
          %159 = dma.hbm_to_vmem [thread:$0]  %s152, 2048, %s154, %s144, 256, 128, 8
        $region24: #{tpu_custom_call.1} parent=19 // pred_fallthru
          _
        // Predicated region
        $region25: #{tpu_custom_call.1} parent=19 // pred_check
          %p160 = pneg %p65
        $region26: #{tpu_custom_call.1} parent=19 // pred_check_branch
          %162 = sbr.rel (%p160) target = $region28
        $region27: #{tpu_custom_call.1} parent=19 // pred_region
          %s163 = sand.u32 %s55, 1
          %s164 = scalar_lea.sflag [#allocation7], %s163
          %s165 = sand.u32 %s55, 1
          %s166 = smul.addr %s165, 4
          %s167 = scalar_lea.vmem [#allocation6], %s166
          %s169 = ssub.s32 64, 64
          %170 = vsyncadd %s164, %s169
          %s171 = smul.addr %s19, 64
          %s172 = scalar_lea.hbm %s1, %s171
          %s174 = sshll.u32 %s167, 4
          %s175 = int_to_ptr.vmem [resolvable:$true] %s174
          %177 = dma.hbm_to_vmem [thread:$0]  %s172, 64, %s175, %s164
        $region28: #{tpu_custom_call.1} parent=19 // pred_fallthru
          _
      $region20: #{tpu_custom_call.1} parent=5 // pred_fallthru
        _
      %p178 = scmp.le.s32.totalorder 1, %s19
      %p179 = scmp.lt.s32.totalorder %s19, 3
      %p180 = pnand %p178, %p179
      %p181 = pneg %p180
      // Predicated region
      $region29: #{tpu_custom_call.1} parent=5 // pred_check
        _
      $region30: #{tpu_custom_call.1} parent=5 // pred_check_branch
        %183 = sbr.rel (%p180) target = $region32
      $region31: #{tpu_custom_call.1} parent=5 // pred_region
        %s184 = ssub.s32 %s19, 1
        %s185 = sand.u32 %s32, 1
        %s186 = scalar_lea.sflag [#allocation4], %s185
        %s187 = sand.u32 %s32, 1
        %s188 = smul.addr %s187, 128
        %s189 = scalar_lea.vmem [#allocation3], %s188
        // Predicated region
        $region33: #{tpu_custom_call.1} parent=31 // pred_check
          %p190 = pneg %p45
        $region34: #{tpu_custom_call.1} parent=31 // pred_check_branch
          %192 = sbr.rel (%p190) target = $region36
        $region35: #{tpu_custom_call.1} parent=31 // pred_region
          %193 = dma.done %s186, 2048
        $region36: #{tpu_custom_call.1} parent=31 // pred_fallthru
          _
        %s194 = sand.u32 %s58, 1
        %s195 = scalar_lea.sflag [#allocation7], %s194
        %s196 = sand.u32 %s58, 1
        %s197 = smul.addr %s196, 4
        %s198 = scalar_lea.vmem [#allocation6], %s197
        // Predicated region
        $region37: #{tpu_custom_call.1} parent=31 // pred_check
          %p199 = pneg %p71
        $region38: #{tpu_custom_call.1} parent=31 // pred_check_branch
          %201 = sbr.rel (%p199) target = $region40
        $region39: #{tpu_custom_call.1} parent=31 // pred_region
          %202 = dma.done %s195, 64
        $region40: #{tpu_custom_call.1} parent=31 // pred_fallthru
          _
        %s203 = sand.u32 %s32, 1
        %s204 = scalar_lea.sflag [#allocation4], %s203
        %s205 = sand.u32 %s32, 1
        %s206 = smul.addr %s205, 128
        %s207 = scalar_lea.vmem [#allocation3], %s206
        %p208 = pneg %p45
        %p209 = pneg %p42
        %s210 = sand.u32 %s58, 1
        %s211 = scalar_lea.sflag [#allocation7], %s210
        %s212 = sand.u32 %s58, 1
        %s213 = smul.addr %s212, 4
        %s214 = scalar_lea.vmem [#allocation6], %s213
        %p215 = pneg %p71
        %p216 = pneg %p68
        %p217 = pneg %p92
        %p218 = pneg %p89
        %p219 = pneg %p118
        %p220 = pneg %p115
        %s221 = sand.u32 %s105, 1
        %s222 = scalar_lea.sflag [#allocation5], %s221
        %s223 = sand.u32 %s105, 1
        %s224 = scalar_lea.vmem [#allocation8], %s223
        %v225 = vld [vmem:[%s189] sm:$0xff]
        %v226 = vld [vmem:[%s189 + $0x8] sm:$0xff]
        %v227 = vld [vmem:[%s189 + $0x10] sm:$0xff]
        %v228 = vld [vmem:[%s189 + $0x18] sm:$0xff]
        %v229 = vld [vmem:[%s189 + $0x20] sm:$0xff]
        %v230 = vld [vmem:[%s189 + $0x28] sm:$0xff]
        %v231 = vld [vmem:[%s189 + $0x30] sm:$0xff]
        %v232 = vld [vmem:[%s189 + $0x38] sm:$0xff]
        %v233 = vld [vmem:[%s189 + $0x40] sm:$0xff]
        %v234 = vld [vmem:[%s189 + $0x48] sm:$0xff]
        %v235 = vld [vmem:[%s189 + $0x50] sm:$0xff]
        %v236 = vld [vmem:[%s189 + $0x58] sm:$0xff]
        %v237 = vld [vmem:[%s189 + $0x60] sm:$0xff]
        %v238 = vld [vmem:[%s189 + $0x68] sm:$0xff]
        %v239 = vld [vmem:[%s189 + $0x70] sm:$0xff]
        %v240 = vld [vmem:[%s189 + $0x78] sm:$0xff]
        %v241 = vld [vmem:[%s198] sm:$0xf]
        %vm242 = vcmask 1043456
        %v243 = vsel %vm242, %v241, 0.0
        %v244 = vrot.slane %v243, 4
        %v245 = vadd.f32 %v243, %v244
        %v246 = vrot.slane %v245, 2
        %v247 = vadd.f32 %v245, %v246
        %v248 = vrot.slane %v247, 1
        %v249 = vadd.f32 %v247, %v248
        %s250 = sld [smem:[#allocation2]]
        %v251 = vstv %s250
        %v252 = vadd.f32 %v249, %v251
        %v253 = vmul.f32 %v225, %v225
        %v254 = vmul.f32 %v226, %v229
        %v255 = vmul.f32 %v227, %v233
        %v256 = vmul.f32 %v228, %v237
        %v257 = vadd.f32 %v253, %v254
        %v258 = vadd.f32 %v257, %v255
        %v259 = vadd.f32 %v258, %v256
        %v260 = vrot.slane %v259, 4
        %v261 = vadd.f32 %v259, %v260
        %v262 = vrot.slane %v261, 2
        %v263 = vadd.f32 %v261, %v262
        %v264 = vrot.slane %v263, 1
        %v265 = vadd.f32 %v263, %v264
        %v266 = vadd.f32 %v265, 0.0
        %v267 = vrot.slane %v253, 4
        %v268 = vadd.f32 %v253, %v267
        %v269 = vrot.slane %v268, 2
        %v270 = vadd.f32 %v268, %v269
        %v271 = vrot.slane %v270, 1
        %v272 = vadd.f32 %v270, %v271
        %v273 = vadd.f32 %v272, 0.0
        %v274 = vmul.f32 %v230, %v230
        %v275 = vmul.f32 %v231, %v234
        %v276 = vmul.f32 %v232, %v238
        %v277 = vadd.f32 %v254, %v274
        %v278 = vadd.f32 %v277, %v275
        %v279 = vadd.f32 %v278, %v276
        %v280 = vrot.slane %v279, 4
        %v281 = vadd.f32 %v279, %v280
        %v282 = vrot.slane %v281, 2
        %v283 = vadd.f32 %v281, %v282
        %v284 = vrot.slane %v283, 1
        %v285 = vadd.f32 %v283, %v284
        %v286 = vadd.f32 %v266, %v285
        %v287 = vrot.slane %v274, 4
        %v288 = vadd.f32 %v274, %v287
        %v289 = vrot.slane %v288, 2
        %v290 = vadd.f32 %v288, %v289
        %v291 = vrot.slane %v290, 1
        %v292 = vadd.f32 %v290, %v291
        %v293 = vadd.f32 %v273, %v292
        %v294 = vmul.f32 %v235, %v235
        %v295 = vmul.f32 %v236, %v239
        %v296 = vadd.f32 %v255, %v275
        %v297 = vadd.f32 %v296, %v294
        %v298 = vadd.f32 %v297, %v295
        %v299 = vrot.slane %v298, 4
        %v300 = vadd.f32 %v298, %v299
        %v301 = vrot.slane %v300, 2
        %v302 = vadd.f32 %v300, %v301
        %v303 = vrot.slane %v302, 1
        %v304 = vadd.f32 %v302, %v303
        %v305 = vadd.f32 %v286, %v304
        %v306 = vrot.slane %v294, 4
        %v307 = vadd.f32 %v294, %v306
        %v308 = vrot.slane %v307, 2
        %v309 = vadd.f32 %v307, %v308
        %v310 = vrot.slane %v309, 1
        %v311 = vadd.f32 %v309, %v310
        %v312 = vadd.f32 %v293, %v311
        %v313 = vmul.f32 %v240, %v240
        %v314 = vadd.f32 %v256, %v276
        %v315 = vadd.f32 %v314, %v295
        %v316 = vadd.f32 %v315, %v313
        %v317 = vrot.slane %v316, 4
        %v318 = vadd.f32 %v316, %v317
        %v319 = vrot.slane %v318, 2
        %v320 = vadd.f32 %v318, %v319
        %v321 = vrot.slane %v320, 1
        %v322 = vadd.f32 %v320, %v321
        %v323 = vadd.f32 %v305, %v322
        %v324 = vrot.slane %v313, 4
        %v325 = vadd.f32 %v313, %v324
        %v326 = vrot.slane %v325, 2
        %v327 = vadd.f32 %v325, %v326
        %v328 = vrot.slane %v327, 1
        %v329 = vadd.f32 %v327, %v328
        %v330 = vadd.f32 %v312, %v329
        %v331 = vsub.f32 %v323, %v330
        %v332 = vmul.f32 %v331, 0.5
        %v333 = vadd.f32 %v252, %v332
        %334 = vst [vmem:[%s224] sm:$0x1] %v333
        %s335 = sand.u32 %s105, 1
        %s336 = scalar_lea.sflag [#allocation5], %s335
        %s337 = sand.u32 %s105, 1
        %s338 = scalar_lea.vmem [#allocation8], %s337
        // Predicated region
        $region41: #{tpu_custom_call.1} parent=31 // pred_check
          %p339 = pneg %p115
        $region42: #{tpu_custom_call.1} parent=31 // pred_check_branch
          %341 = sbr.rel (%p339) target = $region44
        $region43: #{tpu_custom_call.1} parent=31 // pred_region
          %s343 = ssub.s32 16, 16
          %344 = vsyncadd %s336, %s343
          %s345 = smul.addr %s24, 16
          %s346 = scalar_lea.hbm %s3, %s345
          %s348 = sshll.u32 %s338, 4
          %s349 = int_to_ptr.vmem [resolvable:$true] %s348
          %351 = dma.vmem_to_hbm [thread:$0]  %s349, 16, %s346, %s336
        $region44: #{tpu_custom_call.1} parent=31 // pred_fallthru
          _
      $region32: #{tpu_custom_call.1} parent=5 // pred_fallthru
        _
      %p352 = scmp.le.s32.totalorder 2, %s19
      // Predicated region
      $region45: #{tpu_custom_call.1} parent=5 // pred_check
        %p353 = pneg %p352
      $region46: #{tpu_custom_call.1} parent=5 // pred_check_branch
        %355 = sbr.rel (%p353) target = $region48
      $region47: #{tpu_custom_call.1} parent=5 // pred_region
        %s356 = ssub.s32 %s19, 2
        // Predicated region
        $region49: #{tpu_custom_call.1} parent=47 // pred_check
          %p357 = pneg %p121
        $region50: #{tpu_custom_call.1} parent=47 // pred_check_branch
          %359 = sbr.rel (%p357) target = $region52
        $region51: #{tpu_custom_call.1} parent=47 // pred_region
          %s360 = sand.u32 %s106, 1
          %s361 = scalar_lea.sflag [#allocation5], %s360
          %s362 = sand.u32 %s106, 1
          %s363 = scalar_lea.vmem [#allocation8], %s362
          %364 = dma.done %s361, 16
        $region52: #{tpu_custom_call.1} parent=47 // pred_fallthru
          _
      $region48: #{tpu_custom_call.1} parent=5 // pred_fallthru
        _
    $region6: #{tpu_custom_call.1} parent=1 // loop_footer
      %s23 = sadd.s32 1, %s19
    $region7: #{tpu_custom_call.1} parent=1 // loop_footer_branch
      %18 = sbr.rel target = $region3
    $region8: #{tpu_custom_call.1} parent=1 // loop_exit
      _
    %365 = vsyncpa [#allocation4], 1
    %s366 = scalar_lea.sflag [#allocation4], 1
    %367 = vsyncpa %s366, 1
    %368 = vsyncpa [#allocation7], 1
    %s369 = scalar_lea.sflag [#allocation7], 1
    %370 = vsyncpa %s369, 1
    %371 = vsyncpa [#allocation5], 1
    %s372 = scalar_lea.sflag [#allocation5], 1
    %373 = vsyncpa %s372, 1

</llo_original>
